<compile_context>
chip_gen: v7x
topology: tpu7x:2x2x1
jax: 0.10.0
libtpu: 0.0.40
codegen_flags: <defaults>
</compile_context>

<pallas_src>
import jax
import jax.numpy as jnp
from jax.experimental import pallas as pl
from jax.experimental.pallas import tpu as pltpu


def _round_up(x, m):
    return (x + m - 1) // m * m


def gmf_kernel(ids_ref, ut_ref, itw_ref, b_ref, o_ref):
    # ids_ref : (2, TB)    int32  row 0 = user ids, row 1 = item ids (batch on lanes)
    # ut_ref  : (F, R_pad) f32    user table, transposed, VMEM-resident
    # itw_ref : (F, R_pad) f32    (item table * lin_w), transposed, VMEM-resident
    # b_ref   : (1, 1)     f32    Linear bias (SMEM scalar)
    # o_ref   : (1, TB)    f32    sigmoid(prediction), lane-dense
    tb = o_ref.shape[-1]
    rows = ut_ref.shape[-1]

    uid = ids_ref[0:1, :]                                        # (1, TB) i32
    iid = ids_ref[1:2, :]                                        # (1, TB) i32

    # One shared iota for BOTH one-hot gathers (tables padded to same R_pad).
    row_iota = jax.lax.broadcasted_iota(jnp.int32, (rows, tb), 0)
    u_oh = (row_iota == uid).astype(jnp.float32)                 # (R_pad, TB)
    i_oh = (row_iota == iid).astype(jnp.float32)                 # (R_pad, TB)

    # In-kernel row gather via one-hot matmul (tables are tiny & VMEM-resident).
    # TODO(synk): for recommender-scale tables switch to a DMA row gather
    # (memory_space=pl.ANY + pltpu.make_async_copy, or pl.Element row blocks);
    # one-hot cost scales with rows and VMEM residency breaks ~2x earlier on v7x.
    eu = jnp.dot(ut_ref[...], u_oh, preferred_element_type=jnp.float32)    # (F, TB)
    eiw = jnp.dot(itw_ref[...], i_oh, preferred_element_type=jnp.float32)  # (F, TB)

    # GMF head: lin_w is pre-folded into the item table, so the logit is just a
    # sublane (factor) reduction of the elementwise product, plus the bias.
    logits = jnp.sum(eu * eiw, axis=0, keepdims=True)            # (1, TB)
    o_ref[...] = jax.nn.sigmoid(logits + b_ref[0, 0]).astype(o_ref.dtype)


def gmf_forward(user, item, user_table, item_table, lin_w, lin_b, *, tb=2048):
    """Replicates GeneralMatrixFactorizationModel.forward(user, item)."""
    B = user.shape[0]
    U, F = user_table.shape
    I, _ = item_table.shape

    # Batch tile: large (amortizes per-grid-step overhead), multiple of 128,
    # capped at the 128-padded batch. If the batch is big enough, keep >= 2
    # grid steps so the "parallel" axis can shard across both TCs on v7x.
    b128 = _round_up(B, 128)
    tb = _round_up(min(int(tb), b128), 128)
    if b128 >= 256 and pl.cdiv(b128, tb) < 2:
        tb = _round_up(pl.cdiv(b128, 2), 128)
    b_pad = _round_up(B, tb)
    nb = b_pad // tb

    # Pad both tables to the SAME row count so the kernel shares one iota.
    r_pad = max(_round_up(U, 128), _round_up(I, 128))

    # Wrapper-side layout plumbing (parameter-sized, once per call, no hot compute):
    #  * pack ids into one (2, b_pad) array  -> single per-step input DMA
    #  * fold lin_w into the item table      -> removes an (F, TB) vmul per tile
    ids = jnp.zeros((2, b_pad), jnp.int32)
    ids = ids.at[0, :B].set(user.astype(jnp.int32))
    ids = ids.at[1, :B].set(item.astype(jnp.int32))
    ut = jnp.zeros((F, r_pad), jnp.float32).at[:, :U].set(
        user_table.astype(jnp.float32).T)
    itw_rows = item_table.astype(jnp.float32) * lin_w.astype(jnp.float32).reshape(1, F)
    itw = jnp.zeros((F, r_pad), jnp.float32).at[:, :I].set(itw_rows.T)
    bias = lin_b.astype(jnp.float32).reshape(1, 1)               # (1, 1) -> SMEM

    # TODO(synk): when tables grow, single-buffer the constant-index table specs
    # (pipeline_mode=pl.Buffered(1)) and/or raise vmem_limit_bytes on v6e;
    # negligible at these 16 KiB table sizes so left at defaults here.
    out = pl.pallas_call(
        gmf_kernel,
        out_shape=jax.ShapeDtypeStruct((1, b_pad), jnp.float32),
        grid_spec=pltpu.PrefetchScalarGridSpec(
            num_scalar_prefetch=0,
            grid=(nb,),
            in_specs=[
                pl.BlockSpec((2, tb), lambda i: (0, i)),            # packed id tile
                pl.BlockSpec((F, r_pad), lambda i: (0, 0)),         # user table (resident)
                pl.BlockSpec((F, r_pad), lambda i: (0, 0)),         # item table * w (resident)
                pl.BlockSpec(memory_space=pltpu.MemorySpace.SMEM),  # bias scalar
            ],
            out_specs=pl.BlockSpec((1, tb), lambda i: (0, i)),      # lane-dense output
        ),
        compiler_params=pltpu.CompilerParams(
            dimension_semantics=("parallel",)),
    )(ids, ut, itw, bias)

    return out.reshape(-1)[:B]                                     # torch .view(-1)


if __name__ == "__main__":
    # Model hyper-parameters (small, consistent with the module's __init__)
    user_num, item_num, factor_num = 50, 100, 32
    batch = 16

    key = jax.random.PRNGKey(0)
    k_eu, k_ei, k_w, k_b, k_u, k_i = jax.random.split(key, 6)

    # Deterministic parameter init matching the PyTorch module:
    #   embeddings ~ N(0, 0.01), Linear default ~ U(-1/sqrt(F), 1/sqrt(F))
    user_table = 0.01 * jax.random.normal(k_eu, (user_num, factor_num), jnp.float32)
    item_table = 0.01 * jax.random.normal(k_ei, (item_num, factor_num), jnp.float32)
    bound = 1.0 / (factor_num ** 0.5)
    lin_w = jax.random.uniform(k_w, (1, factor_num), jnp.float32, -bound, bound)
    lin_b = jax.random.uniform(k_b, (1,), jnp.float32, -bound, bound)

    # Example inputs: integer user / item ids
    user = jax.random.randint(k_u, (batch,), 0, user_num, jnp.int32)
    item = jax.random.randint(k_i, (batch,), 0, item_num, jnp.int32)

    pred = gmf_forward(user, item, user_table, item_table, lin_w, lin_b)
    pred = jax.block_until_ready(pred)

    # Pure-JAX reference check (same math as the PyTorch forward)
    eu = user_table[user]
    ei = item_table[item]
    ref = jax.nn.sigmoid((eu * ei) @ lin_w.T + lin_b).reshape(-1)
    assert pred.shape == (batch,)
    assert jnp.allclose(pred, ref, atol=1e-6, rtol=1e-6), \
        float(jnp.max(jnp.abs(pred - ref)))

    print("KERNEL_OK")
</pallas_src>

<mosaic_0001>
module attributes {stable_mosaic.version = 11 : i64} {
  func.func @gmf_kernel(%arg0: i32, %arg1: memref<2x128xi32, #tpu.memory_space<vmem>>, %arg2: memref<32x128xf32, #tpu.memory_space<vmem>>, %arg3: memref<32x128xf32, #tpu.memory_space<vmem>>, %arg4: memref<1x1xf32, #tpu.memory_space<smem>>, %arg5: memref<1x128xf32, #tpu.memory_space<vmem>>) attributes {dimension_semantics = [#tpu.dimension_semantics<parallel>], iteration_bounds = array<i64: 1>, scalar_prefetch = 0 : i64, scratch_operands = 0 : i64, tpu.core_type = #tpu.core_type<tc>, window_params = [{transform_indices = @transform_0, window_bounds = array<i64: 2, 128>}, {pipeline_mode = #tpu.pipeline_mode<synchronous>, transform_indices = @transform_1, window_bounds = array<i64: 32, 128>}, {pipeline_mode = #tpu.pipeline_mode<synchronous>, transform_indices = @transform_2, window_bounds = array<i64: 32, 128>}, {transform_indices = @transform_3, window_bounds = array<i64: 1, 1>}, {transform_indices = @transform_4, window_bounds = array<i64: 1, 128>}]} {
    %c0 = arith.constant 0 : index
    %c0_0 = arith.constant 0 : index
    %0 = vector.load %arg1[%c0, %c0_0] : memref<2x128xi32, #tpu.memory_space<vmem>>, vector<1x128xi32>
    %c1 = arith.constant 1 : index
    %c0_1 = arith.constant 0 : index
    %1 = vector.load %arg1[%c1, %c0_1] : memref<2x128xi32, #tpu.memory_space<vmem>>, vector<1x128xi32>
    %2 = tpu.iota {dimensions = array<i32: 0>} : vector<128x128xi32>
    %3 = vector.broadcast %0 : vector<1x128xi32> to vector<128x128xi32>
    %4 = arith.cmpi eq, %2, %3 : vector<128x128xi32>
    %5 = arith.extui %4 : vector<128x128xi1> to vector<128x128xi32>
    %6 = arith.sitofp %5 : vector<128x128xi32> to vector<128x128xf32>
    %7 = vector.broadcast %1 : vector<1x128xi32> to vector<128x128xi32>
    %8 = arith.cmpi eq, %2, %7 : vector<128x128xi32>
    %9 = arith.extui %8 : vector<128x128xi1> to vector<128x128xi32>
    %10 = arith.sitofp %9 : vector<128x128xi32> to vector<128x128xf32>
    %c0_2 = arith.constant 0 : index
    %c0_3 = arith.constant 0 : index
    %11 = vector.load %arg2[%c0_2, %c0_3] : memref<32x128xf32, #tpu.memory_space<vmem>>, vector<32x128xf32>
    %cst = arith.constant dense<0.000000e+00> : vector<32x128xf32>
    %12 = tpu.matmul %11, %6, %cst {dimension_numbers = #tpu.dot_dimension_numbers<[1], [0], [0], [1], [0, 0, 1, 1], [], []>} : vector<32x128xf32>, vector<128x128xf32>, vector<32x128xf32> -> vector<32x128xf32>
    %c0_4 = arith.constant 0 : index
    %c0_5 = arith.constant 0 : index
    %13 = vector.load %arg3[%c0_4, %c0_5] : memref<32x128xf32, #tpu.memory_space<vmem>>, vector<32x128xf32>
    %cst_6 = arith.constant dense<0.000000e+00> : vector<32x128xf32>
    %14 = tpu.matmul %13, %10, %cst_6 {dimension_numbers = #tpu.dot_dimension_numbers<[1], [0], [0], [1], [0, 0, 1, 1], [], []>} : vector<32x128xf32>, vector<128x128xf32>, vector<32x128xf32> -> vector<32x128xf32>
    %15 = arith.mulf %12, %14 : vector<32x128xf32>
    %cst_7 = arith.constant dense<0.000000e+00> : vector<128xf32>
    %16 = vector.multi_reduction <add>, %15, %cst_7 [0] : vector<32x128xf32> to vector<128xf32>
    %17 = vector.shape_cast %16 : vector<128xf32> to vector<1x128xf32>
    %c0_8 = arith.constant 0 : index
    %c0_9 = arith.constant 0 : index
    %18 = memref.load %arg4[%c0_8, %c0_9] : memref<1x1xf32, #tpu.memory_space<smem>>
    %19 = vector.broadcast %18 : f32 to vector<1x128xf32>
    %20 = arith.addf %17, %19 : vector<1x128xf32>
    %21 = arith.negf %20 : vector<1x128xf32>
    %22 = math.exp %21 : vector<1x128xf32>
    %cst_10 = arith.constant 1.000000e+00 : f32
    %23 = vector.broadcast %cst_10 : f32 to vector<1x128xf32>
    %24 = arith.addf %23, %22 : vector<1x128xf32>
    %25 = arith.divf %23, %24 : vector<1x128xf32>
    %c0_11 = arith.constant 0 : index
    %c0_12 = arith.constant 0 : index
    %26 = vector.load %arg5[%c0_11, %c0_12] : memref<1x128xf32, #tpu.memory_space<vmem>>, vector<1x128xf32>
    tpu.vector_store %arg5[%c0_11, %c0_12], %25 {strides = array<i32>} : memref<1x128xf32, #tpu.memory_space<vmem>>, vector<1x128xf32>,
    return
  }
  func.func @transform_0(%arg0: i32) -> (i32, i32) {
    %c0_i32 = arith.constant 0 : i32
    %c0_i32_0 = arith.constant 0 : i32
    return %c0_i32, %arg0 : i32, i32
  }
  func.func @transform_1(%arg0: i32) -> (i32, i32) {
    %c0_i32 = arith.constant 0 : i32
    %c0_i32_0 = arith.constant 0 : i32
    %c0_i32_1 = arith.constant 0 : i32
    return %c0_i32, %c0_i32_0 : i32, i32
  }
  func.func @transform_2(%arg0: i32) -> (i32, i32) {
    %c0_i32 = arith.constant 0 : i32
    %c0_i32_0 = arith.constant 0 : i32
    %c0_i32_1 = arith.constant 0 : i32
    return %c0_i32, %c0_i32_0 : i32, i32
  }
  func.func @transform_3(%arg0: i32) -> (i32, i32) {
    %c0_i32 = arith.constant 0 : i32
    %c0_i32_0 = arith.constant 0 : i32
    %c0_i32_1 = arith.constant 0 : i32
    return %c0_i32, %c0_i32_0 : i32, i32
  }
  func.func @transform_4(%arg0: i32) -> (i32, i32) {
    %c0_i32 = arith.constant 0 : i32
    %c0_i32_0 = arith.constant 0 : i32
    return %c0_i32, %arg0 : i32, i32
  }
}

</mosaic_0001>

<llo_original>
// kernel: tpu_custom_call.1
$region0: #{tpu_custom_call.1}
  #allocation0 [shape = 'u32[]', space=smem, size = 0x4, offset = 0x4, fixed_abs, tag = 'smem constant byte address 0x4 - core index']
  #allocation1 [shape = 'u32[144,128]{1,0:T(1,128)}', space=vmem, size = 0x12000, scoped, tag = 'internal scratch']
  #allocation2 [shape = 'f32[1,1]{1,0:T(1,128)S(6)}', space=smem, size = 0x200, scoped, tag = 'scoped memory for tpu_custom_call.1']
  %s0 = inlined_call_operand.vmem [shape: s32[2,128], index: 0, kind: input, shape index: {}]
  %s1 = inlined_call_operand.hbm [shape: f32[32,128], index: 1, kind: input, shape index: {}]
  %s2 = inlined_call_operand.hbm [shape: f32[32,128], index: 2, kind: input, shape index: {}]
  %s3 = inlined_call_operand.<no memory space> [shape: f32[1,1], index: 3, kind: input, shape index: {}]
  %s4 = inlined_call_operand.hbm [shape: f32[1,128], index: 4, kind: output, shape index: {}]
  %s5 = sld [smem:[#allocation0]]
  $region34: #{tpu_custom_call.1} parent=0
    _
  %s7 = ssub.s32 1, %s5
  %s8 = scalar_select 0, %s7, %s5
  %9 = sst [smem:[#allocation2]] %s3
  $region1: #{tpu_custom_call.1} parent=0
    #allocation3 [shape = 'u8[16384]{0}', space=vmem, size = 0x4000, scoped, tag = 'input window, operand 1, single buffered']
    #allocation4 [shape = 's32[1]{0}', space=sflag, size = 0x4, scoped, tag = 'scoped memory for tpu_custom_call.1']
    #allocation5 [shape = 's32[1]{0}', space=sflag, size = 0x4, scoped, tag = 'scoped memory for tpu_custom_call.1']
    #allocation6 [shape = 'u8[16384]{0}', space=vmem, size = 0x4000, scoped, tag = 'input window, operand 2, single buffered']
    #allocation7 [shape = 's32[1]{0}', space=sflag, size = 0x4, scoped, tag = 'scoped memory for tpu_custom_call.1']
    #allocation8 [shape = 'u8[512]{0}', space=vmem, size = 0x400, scoped, tag = 'output window, operand 0, single buffered']
    %10 = vsyncpa [#allocation4], 0
    %11 = vsyncpa [#allocation7], 0
    %12 = vsyncpa [#allocation5], 0
    // Predicated region
    $region2: #{tpu_custom_call.1} parent=1 // pred_check
      _
    $region3: #{tpu_custom_call.1} parent=1 // pred_check_branch
      %14 = sbr.rel (0) target = $region5
    $region4: #{tpu_custom_call.1} parent=1 // pred_region
      _
    $region5: #{tpu_custom_call.1} parent=1 // pred_fallthru
      _
    // Predicated region
    $region6: #{tpu_custom_call.1} parent=1 // pred_check
      _
    $region7: #{tpu_custom_call.1} parent=1 // pred_check_branch
      %16 = sbr.rel (0) target = $region9
    $region8: #{tpu_custom_call.1} parent=1 // pred_region
      %s18 = ssub.s32 512, 512
      %19 = vsyncadd [#allocation4], %s18
      %s20 = sshll.u32 [#allocation3], 4
      %s21 = int_to_ptr.vmem [resolvable:$true] %s20
      %26 = dma.hbm_to_vmem [thread:$0]  %s1, 512, %s21, [#allocation4], 128, 128, 8
    $region9: #{tpu_custom_call.1} parent=1 // pred_fallthru
      _
    // Predicated region
    $region10: #{tpu_custom_call.1} parent=1 // pred_check
      _
    $region11: #{tpu_custom_call.1} parent=1 // pred_check_branch
      %28 = sbr.rel (0) target = $region13
    $region12: #{tpu_custom_call.1} parent=1 // pred_region
      %s30 = ssub.s32 512, 512
      %31 = vsyncadd [#allocation7], %s30
      %s32 = sshll.u32 [#allocation6], 4
      %s33 = int_to_ptr.vmem [resolvable:$true] %s32
      %38 = dma.hbm_to_vmem [thread:$0]  %s2, 512, %s33, [#allocation7], 128, 128, 8
    $region13: #{tpu_custom_call.1} parent=1 // pred_fallthru
      _
    // Predicated region
    $region14: #{tpu_custom_call.1} parent=1 // pred_check
      _
    $region15: #{tpu_custom_call.1} parent=1 // pred_check_branch
      %40 = sbr.rel (0) target = $region17
    $region16: #{tpu_custom_call.1} parent=1 // pred_region
      _
    $region17: #{tpu_custom_call.1} parent=1 // pred_fallthru
      _
    // Predicated region
    $region18: #{tpu_custom_call.1} parent=1 // pred_check
      _
    $region19: #{tpu_custom_call.1} parent=1 // pred_check_branch
      %42 = sbr.rel (0) target = $region21
    $region20: #{tpu_custom_call.1} parent=1 // pred_region
      %43 = dma.done [#allocation4], 512
    $region21: #{tpu_custom_call.1} parent=1 // pred_fallthru
      _
    // Predicated region
    $region22: #{tpu_custom_call.1} parent=1 // pred_check
      _
    $region23: #{tpu_custom_call.1} parent=1 // pred_check_branch
      %45 = sbr.rel (0) target = $region25
    $region24: #{tpu_custom_call.1} parent=1 // pred_region
      %46 = dma.done [#allocation7], 512
    $region25: #{tpu_custom_call.1} parent=1 // pred_fallthru
      _
    %v47 = vld [vmem:[%s0] sm:$0x1]
    %v48 = vld [vmem:[%s0 + $0x1] sm:$0x1]
    %v49 = vlaneseq
    %v50 = vshrl.u32 %v49, 7
    %v51 = vadd.s32 %v50, 8
    %v52 = vadd.s32 %v50, 16
    %v53 = vadd.s32 %v50, 24
    %v54 = vadd.s32 %v50, 32
    %v55 = vadd.s32 %v50, 40
    %v56 = vadd.s32 %v50, 48
    %v57 = vadd.s32 %v50, 56
    %v58 = vadd.s32 %v50, 64
    %v59 = vadd.s32 %v50, 72
    %v60 = vadd.s32 %v50, 80
    %v61 = vadd.s32 %v50, 88
    %v62 = vadd.s32 %v50, 96
    %v63 = vadd.s32 %v50, 104
    %v64 = vadd.s32 %v50, 112
    %v65 = vadd.s32 %v50, 120
    %v66 = vlaneseq
    %v67 = vshrl.u32 %v66, 7
    %v68 = vsub.s32 0, %v67
    %v69 = vrot.slane %v47, %v68
    %vm70 = vcmp.eq.s32.totalorder %v50, %v69
    %vm71 = vcmp.eq.s32.totalorder %v51, %v69
    %vm72 = vcmp.eq.s32.totalorder %v52, %v69
    %vm73 = vcmp.eq.s32.totalorder %v53, %v69
    %vm74 = vcmp.eq.s32.totalorder %v54, %v69
    %vm75 = vcmp.eq.s32.totalorder %v55, %v69
    %vm76 = vcmp.eq.s32.totalorder %v56, %v69
    %vm77 = vcmp.eq.s32.totalorder %v57, %v69
    %vm78 = vcmp.eq.s32.totalorder %v58, %v69
    %vm79 = vcmp.eq.s32.totalorder %v59, %v69
    %vm80 = vcmp.eq.s32.totalorder %v60, %v69
    %vm81 = vcmp.eq.s32.totalorder %v61, %v69
    %vm82 = vcmp.eq.s32.totalorder %v62, %v69
    %vm83 = vcmp.eq.s32.totalorder %v63, %v69
    %vm84 = vcmp.eq.s32.totalorder %v64, %v69
    %vm85 = vcmp.eq.s32.totalorder %v65, %v69
    %v86 = vsel %vm70, 1, 0
    %v87 = vsel %vm71, 1, 0
    %v88 = vsel %vm72, 1, 0
    %v89 = vsel %vm73, 1, 0
    %v90 = vsel %vm74, 1, 0
    %v91 = vsel %vm75, 1, 0
    %v92 = vsel %vm76, 1, 0
    %v93 = vsel %vm77, 1, 0
    %v94 = vsel %vm78, 1, 0
    %v95 = vsel %vm79, 1, 0
    %v96 = vsel %vm80, 1, 0
    %v97 = vsel %vm81, 1, 0
    %v98 = vsel %vm82, 1, 0
    %v99 = vsel %vm83, 1, 0
    %v100 = vsel %vm84, 1, 0
    %v101 = vsel %vm85, 1, 0
    %v102 = vcvt.s32.f32 %v86
    %v103 = vcvt.s32.f32 %v87
    %v104 = vcvt.s32.f32 %v88
    %v105 = vcvt.s32.f32 %v89
    %v106 = vcvt.s32.f32 %v90
    %v107 = vcvt.s32.f32 %v91
    %v108 = vcvt.s32.f32 %v92
    %v109 = vcvt.s32.f32 %v93
    %v110 = vcvt.s32.f32 %v94
    %v111 = vcvt.s32.f32 %v95
    %v112 = vcvt.s32.f32 %v96
    %v113 = vcvt.s32.f32 %v97
    %v114 = vcvt.s32.f32 %v98
    %v115 = vcvt.s32.f32 %v99
    %v116 = vcvt.s32.f32 %v100
    %v117 = vcvt.s32.f32 %v101
    %v118 = vlaneseq
    %v119 = vshrl.u32 %v118, 7
    %v120 = vsub.s32 0, %v119
    %v121 = vrot.slane %v48, %v120
    %vm122 = vcmp.eq.s32.totalorder %v50, %v121
    %vm123 = vcmp.eq.s32.totalorder %v51, %v121
    %vm124 = vcmp.eq.s32.totalorder %v52, %v121
    %vm125 = vcmp.eq.s32.totalorder %v53, %v121
    %vm126 = vcmp.eq.s32.totalorder %v54, %v121
    %vm127 = vcmp.eq.s32.totalorder %v55, %v121
    %vm128 = vcmp.eq.s32.totalorder %v56, %v121
    %vm129 = vcmp.eq.s32.totalorder %v57, %v121
    %vm130 = vcmp.eq.s32.totalorder %v58, %v121
    %vm131 = vcmp.eq.s32.totalorder %v59, %v121
    %vm132 = vcmp.eq.s32.totalorder %v60, %v121
    %vm133 = vcmp.eq.s32.totalorder %v61, %v121
    %vm134 = vcmp.eq.s32.totalorder %v62, %v121
    %vm135 = vcmp.eq.s32.totalorder %v63, %v121
    %vm136 = vcmp.eq.s32.totalorder %v64, %v121
    %vm137 = vcmp.eq.s32.totalorder %v65, %v121
    %v138 = vsel %vm122, 1, 0
    %v139 = vsel %vm123, 1, 0
    %v140 = vsel %vm124, 1, 0
    %v141 = vsel %vm125, 1, 0
    %v142 = vsel %vm126, 1, 0
    %v143 = vsel %vm127, 1, 0
    %v144 = vsel %vm128, 1, 0
    %v145 = vsel %vm129, 1, 0
    %v146 = vsel %vm130, 1, 0
    %v147 = vsel %vm131, 1, 0
    %v148 = vsel %vm132, 1, 0
    %v149 = vsel %vm133, 1, 0
    %v150 = vsel %vm134, 1, 0
    %v151 = vsel %vm135, 1, 0
    %v152 = vsel %vm136, 1, 0
    %v153 = vsel %vm137, 1, 0
    %v154 = vcvt.s32.f32 %v138
    %v155 = vcvt.s32.f32 %v139
    %v156 = vcvt.s32.f32 %v140
    %v157 = vcvt.s32.f32 %v141
    %v158 = vcvt.s32.f32 %v142
    %v159 = vcvt.s32.f32 %v143
    %v160 = vcvt.s32.f32 %v144
    %v161 = vcvt.s32.f32 %v145
    %v162 = vcvt.s32.f32 %v146
    %v163 = vcvt.s32.f32 %v147
    %v164 = vcvt.s32.f32 %v148
    %v165 = vcvt.s32.f32 %v149
    %v166 = vcvt.s32.f32 %v150
    %v167 = vcvt.s32.f32 %v151
    %v168 = vcvt.s32.f32 %v152
    %v169 = vcvt.s32.f32 %v153
    %v170 = vld [vmem:[#allocation3] sm:$0xff]
    %v171 = vld [vmem:[#allocation3 + $0x8] sm:$0xff]
    %v172 = vld [vmem:[#allocation3 + $0x10] sm:$0xff]
    %v173 = vld [vmem:[#allocation3 + $0x18] sm:$0xff]
    %174 = vmatprep.subr.mxu0 0.0
    %175 = vmatpush1.msra.mxu0 %v102
    %176 = vmatprep.subr.mxu0 0.0
    %177 = vmatpush1.msra.mxu0 %v103
    %178 = vmatprep.subr.mxu0 0.0
    %179 = vmatpush1.msra.mxu0 %v104
    %180 = vmatprep.subr.mxu0 0.0
    %181 = vmatpush1.msra.mxu0 %v105
    %182 = vmatprep.subr.mxu0 0.0
    %183 = vmatpush1.msra.mxu0 %v106
    %184 = vmatprep.subr.mxu0 0.0
    %185 = vmatpush1.msra.mxu0 %v107
    %186 = vmatprep.subr.mxu0 0.0
    %187 = vmatpush1.msra.mxu0 %v108
    %188 = vmatprep.subr.mxu0 0.0
    %189 = vmatpush1.msra.mxu0 %v109
    %190 = vmatprep.subr.mxu0 0.0
    %191 = vmatpush1.msra.mxu0 %v110
    %192 = vmatprep.subr.mxu0 0.0
    %193 = vmatpush1.msra.mxu0 %v111
    %194 = vmatprep.subr.mxu0 0.0
    %195 = vmatpush1.msra.mxu0 %v112
    %196 = vmatprep.subr.mxu0 0.0
    %197 = vmatpush1.msra.mxu0 %v113
    %198 = vmatprep.subr.mxu0 0.0
    %199 = vmatpush1.msra.mxu0 %v114
    %200 = vmatprep.subr.mxu0 0.0
    %201 = vmatpush1.msra.mxu0 %v115
    %202 = vmatprep.subr.mxu0 0.0
    %203 = vmatpush1.msra.mxu0 %v116
    %204 = vmatprep.subr.mxu0 0.0
    %205 = vmatpush1.msra.mxu0 %v117
    %206 = vmatprep.subr.mxu0 0.0
    %207 = vmatpush1.msra.mxu0 0.0
    %208 = vmatprep.subr.mxu0 0.0
    %209 = vmatpush1.msra.mxu0 0.0
    %210 = vmatprep.subr.mxu0 0.0
    %211 = vmatpush1.msra.mxu0 0.0
    %212 = vmatprep.subr.mxu0 0.0
    %213 = vmatpush1.msra.mxu0 0.0
    %214 = vmatprep.subr.mxu0 0.0
    %215 = vmatpush1.msra.mxu0 0.0
    %216 = vmatprep.subr.mxu0 0.0
    %217 = vmatpush1.msra.mxu0 0.0
    %218 = vmatprep.subr.mxu0 0.0
    %219 = vmatpush1.msra.mxu0 0.0
    %220 = vmatprep.subr.mxu0 0.0
    %221 = vmatpush1.msra.mxu0 0.0
    %222 = vmatprep.subr.mxu0 0.0
    %223 = vmatpush1.msra.mxu0 0.0
    %224 = vmatprep.subr.mxu0 0.0
    %225 = vmatpush1.msra.mxu0 0.0
    %226 = vmatprep.subr.mxu0 0.0
    %227 = vmatpush1.msra.mxu0 0.0
    %228 = vmatprep.subr.mxu0 0.0
    %229 = vmatpush1.msra.mxu0 0.0
    %230 = vmatprep.subr.mxu0 0.0
    %231 = vmatpush1.msra.mxu0 0.0
    %232 = vmatprep.subr.mxu0 0.0
    %233 = vmatpush1.msra.mxu0 0.0
    %234 = vmatprep.subr.mxu0 0.0
    %235 = vmatpush1.msra.mxu0 0.0
    %236 = vmatprep.subr.mxu0 0.0
    %237 = vmatpush1.msra.mxu0 0.0
    %238 = vmatprep.mubr.f32.mxu0 0.0
    %239 = vmatmul.mubr.f32.gmra.mrb[0].mxu0 %v170
    %v240 = vpop.f32.mrb[0].mxu0
    %v241 = vadd.f32 0.0, %v240
    %v242 = vpop.f32.mrb[0].mxu0
    %243 = vmatprep.mubr.f32.mxu0 0.0
    %244 = vmatmul.mubr.f32.gmra.mrb[0].mxu0 %v171
    %v245 = vpop.f32.mrb[0].mxu0
    %v246 = vadd.f32 0.0, %v245
    %v247 = vpop.f32.mrb[0].mxu0
    %248 = vmatprep.mubr.f32.mxu0 0.0
    %249 = vmatmul.mubr.f32.gmra.mrb[0].mxu0 %v172
    %v250 = vpop.f32.mrb[0].mxu0
    %v251 = vadd.f32 0.0, %v250
    %v252 = vpop.f32.mrb[0].mxu0
    %253 = vmatprep.mubr.f32.mxu0 0.0
    %254 = vmatmul.mubr.f32.gmra.mrb[0].mxu0 %v173
    %v255 = vpop.f32.mrb[0].mxu0
    %v256 = vadd.f32 0.0, %v255
    %v257 = vpop.f32.mrb[0].mxu0
    %258 = vdwg.mxu0
    %v259 = vld [vmem:[#allocation6] sm:$0xff]
    %v260 = vld [vmem:[#allocation6 + $0x8] sm:$0xff]
    %v261 = vld [vmem:[#allocation6 + $0x10] sm:$0xff]
    %v262 = vld [vmem:[#allocation6 + $0x18] sm:$0xff]
    %263 = vmatprep.subr.mxu0 0.0
    %264 = vmatpush1.msra.mxu0 %v154
    %265 = vmatprep.subr.mxu0 0.0
    %266 = vmatpush1.msra.mxu0 %v155
    %267 = vmatprep.subr.mxu0 0.0
    %268 = vmatpush1.msra.mxu0 %v156
    %269 = vmatprep.subr.mxu0 0.0
    %270 = vmatpush1.msra.mxu0 %v157
    %271 = vmatprep.subr.mxu0 0.0
    %272 = vmatpush1.msra.mxu0 %v158
    %273 = vmatprep.subr.mxu0 0.0
    %274 = vmatpush1.msra.mxu0 %v159
    %275 = vmatprep.subr.mxu0 0.0
    %276 = vmatpush1.msra.mxu0 %v160
    %277 = vmatprep.subr.mxu0 0.0
    %278 = vmatpush1.msra.mxu0 %v161
    %279 = vmatprep.subr.mxu0 0.0
    %280 = vmatpush1.msra.mxu0 %v162
    %281 = vmatprep.subr.mxu0 0.0
    %282 = vmatpush1.msra.mxu0 %v163
    %283 = vmatprep.subr.mxu0 0.0
    %284 = vmatpush1.msra.mxu0 %v164
    %285 = vmatprep.subr.mxu0 0.0
    %286 = vmatpush1.msra.mxu0 %v165
    %287 = vmatprep.subr.mxu0 0.0
    %288 = vmatpush1.msra.mxu0 %v166
    %289 = vmatprep.subr.mxu0 0.0
    %290 = vmatpush1.msra.mxu0 %v167
    %291 = vmatprep.subr.mxu0 0.0
    %292 = vmatpush1.msra.mxu0 %v168
    %293 = vmatprep.subr.mxu0 0.0
    %294 = vmatpush1.msra.mxu0 %v169
    %295 = vmatprep.subr.mxu0 0.0
    %296 = vmatpush1.msra.mxu0 0.0
    %297 = vmatprep.subr.mxu0 0.0
    %298 = vmatpush1.msra.mxu0 0.0
    %299 = vmatprep.subr.mxu0 0.0
    %300 = vmatpush1.msra.mxu0 0.0
    %301 = vmatprep.subr.mxu0 0.0
    %302 = vmatpush1.msra.mxu0 0.0
    %303 = vmatprep.subr.mxu0 0.0
    %304 = vmatpush1.msra.mxu0 0.0
    %305 = vmatprep.subr.mxu0 0.0
    %306 = vmatpush1.msra.mxu0 0.0
    %307 = vmatprep.subr.mxu0 0.0
    %308 = vmatpush1.msra.mxu0 0.0
    %309 = vmatprep.subr.mxu0 0.0
    %310 = vmatpush1.msra.mxu0 0.0
    %311 = vmatprep.subr.mxu0 0.0
    %312 = vmatpush1.msra.mxu0 0.0
    %313 = vmatprep.subr.mxu0 0.0
    %314 = vmatpush1.msra.mxu0 0.0
    %315 = vmatprep.subr.mxu0 0.0
    %316 = vmatpush1.msra.mxu0 0.0
    %317 = vmatprep.subr.mxu0 0.0
    %318 = vmatpush1.msra.mxu0 0.0
    %319 = vmatprep.subr.mxu0 0.0
    %320 = vmatpush1.msra.mxu0 0.0
    %321 = vmatprep.subr.mxu0 0.0
    %322 = vmatpush1.msra.mxu0 0.0
    %323 = vmatprep.subr.mxu0 0.0
    %324 = vmatpush1.msra.mxu0 0.0
    %325 = vmatprep.subr.mxu0 0.0
    %326 = vmatpush1.msra.mxu0 0.0
    %327 = vmatprep.mubr.f32.mxu0 0.0
    %328 = vmatmul.mubr.f32.gmra.mrb[0].mxu0 %v259
    %v329 = vpop.f32.mrb[0].mxu0
    %v330 = vadd.f32 0.0, %v329
    %v331 = vpop.f32.mrb[0].mxu0
    %332 = vmatprep.mubr.f32.mxu0 0.0
    %333 = vmatmul.mubr.f32.gmra.mrb[0].mxu0 %v260
    %v334 = vpop.f32.mrb[0].mxu0
    %v335 = vadd.f32 0.0, %v334
    %v336 = vpop.f32.mrb[0].mxu0
    %337 = vmatprep.mubr.f32.mxu0 0.0
    %338 = vmatmul.mubr.f32.gmra.mrb[0].mxu0 %v261
    %v339 = vpop.f32.mrb[0].mxu0
    %v340 = vadd.f32 0.0, %v339
    %v341 = vpop.f32.mrb[0].mxu0
    %342 = vmatprep.mubr.f32.mxu0 0.0
    %343 = vmatmul.mubr.f32.gmra.mrb[0].mxu0 %v262
    %v344 = vpop.f32.mrb[0].mxu0
    %v345 = vadd.f32 0.0, %v344
    %v346 = vpop.f32.mrb[0].mxu0
    %347 = vdwg.mxu0
    %v348 = vmul.f32 %v241, %v330
    %v349 = vmul.f32 %v246, %v335
    %v350 = vmul.f32 %v251, %v340
    %v351 = vmul.f32 %v256, %v345
    %v352 = vadd.f32 %v348, %v349
    %v353 = vadd.f32 %v352, %v350
    %v354 = vadd.f32 %v353, %v351
    %v355 = vrot.slane %v354, 4
    %v356 = vadd.f32 %v354, %v355
    %v357 = vrot.slane %v356, 2
    %v358 = vadd.f32 %v356, %v357
    %v359 = vrot.slane %v358, 1
    %v360 = vadd.f32 %v358, %v359
    %s361 = sld [smem:[#allocation2]]
    %v362 = vstv %s361
    %v363 = vadd.f32 %v360, %v362
    %v364 = vxor.u32 %v363, 2147483648
    %v365 = vmul.f32 %v364, 1.442695
    %v366 = vpow.pop %v365
    %v367 = vadd.f32 %v366, 1.0
    %v368 = vrcp.pop %v367
    %v369 = vmul.f32 1.0, %v368
    %370 = vst [vmem:[#allocation8] sm:$0x1] %v369
    // Predicated region
    $region26: #{tpu_custom_call.1} parent=1 // pred_check
      _
    $region27: #{tpu_custom_call.1} parent=1 // pred_check_branch
      %372 = sbr.rel (0) target = $region29
    $region28: #{tpu_custom_call.1} parent=1 // pred_region
      %s374 = ssub.s32 16, 16
      %375 = vsyncadd [#allocation5], %s374
      %s377 = sshll.u32 [#allocation8], 4
      %s378 = int_to_ptr.vmem [resolvable:$true] %s377
      %380 = dma.vmem_to_hbm [thread:$0]  %s378, 16, %s4, [#allocation5]
    $region29: #{tpu_custom_call.1} parent=1 // pred_fallthru
      _
    // Predicated region
    $region30: #{tpu_custom_call.1} parent=1 // pred_check
      _
    $region31: #{tpu_custom_call.1} parent=1 // pred_check_branch
      %382 = sbr.rel (0) target = $region33
    $region32: #{tpu_custom_call.1} parent=1 // pred_region
      %383 = dma.done [#allocation5], 16
    $region33: #{tpu_custom_call.1} parent=1 // pred_fallthru
      _
    %384 = vsyncpa [#allocation4], 1
    %385 = vsyncpa [#allocation7], 1
    %386 = vsyncpa [#allocation5], 1

</llo_original>
